<compile_context>
chip_gen: v7x
topology: tpu7x:2x2x1
jax: 0.10.0
libtpu: 0.0.40
codegen_flags: <defaults>
</compile_context>

<pallas_src>
import functools

import jax
import jax.numpy as jnp
from jax import lax
from jax.experimental import pallas as pl
from jax.experimental.pallas import tpu as pltpu

_LANE = 128


def _cdiv(a: int, b: int) -> int:
    return -(-a // b)


def _round_up(x: int, m: int) -> int:
    return _cdiv(x, m) * m


def _round_down(x: int, m: int) -> int:
    return (x // m) * m


# --------------------------------------------------------------------------
# Kernels.  Grid = (split, batch, hw_tile); hw_tile (the Gram contraction) is
# the innermost / "arbitrary" axis, split & batch are "parallel".
# --------------------------------------------------------------------------
def _gram_diff_fused_kernel(xy_ref, out_ref, acc_ref, *, C):
    """Fused path (2C fits one MXU tile).

    xy_ref : (1, 2C, TILE_HW) — x and y stacked on the channel axis.
    out_ref: (1, 1, C, C)     — unnormalized partial (Gx - Gy) for this split.
    acc_ref: (2C, 2C) f32     — stacked-Gram accumulator (resident across k).
    """
    k = pl.program_id(2)

    @pl.when(k == 0)
    def _():
        acc_ref[...] = jnp.zeros_like(acc_ref)

    f = xy_ref[0]                                   # (2C, TILE_HW)
    dn = (((1,), (1,)), ((), ()))                   # contract shared spatial dim
    acc_ref[...] += lax.dot_general(f, f, dimension_numbers=dn,
                                    preferred_element_type=jnp.float32)

    @pl.when(k == pl.num_programs(2) - 1)
    def _():
        acc = acc_ref[...]
        # Diagonal blocks of the stacked Gram are Gx and Gy (unnormalized).
        out_ref[0, 0] = acc[:C, :C] - acc[C:, C:]


def _gram_diff_split_kernel(x_ref, y_ref, out_ref, gx_acc, gy_acc):
    """Two-matmul path for large C.

    x_ref, y_ref : (1, C, TILE_HW) input tiles.
    out_ref      : (1, 1, C, C) unnormalized partial (Gx - Gy).
    gx_acc/gy_acc: (C, C) f32 Gram accumulators (resident across k).
    """
    k = pl.program_id(2)

    @pl.when(k == 0)
    def _():
        gx_acc[...] = jnp.zeros_like(gx_acc)
        gy_acc[...] = jnp.zeros_like(gy_acc)

    dn = (((1,), (1,)), ((), ()))
    fx = x_ref[0]                                   # (C, TILE_HW)
    fy = y_ref[0]
    gx_acc[...] += lax.dot_general(fx, fx, dimension_numbers=dn,
                                   preferred_element_type=jnp.float32)
    gy_acc[...] += lax.dot_general(fy, fy, dimension_numbers=dn,
                                   preferred_element_type=jnp.float32)

    @pl.when(k == pl.num_programs(2) - 1)
    def _():
        out_ref[0, 0] = gx_acc[...] - gy_acc[...]


# --------------------------------------------------------------------------
# Wrapper.
# --------------------------------------------------------------------------
def _vmem_cap_bytes() -> int:
    """Generation-aware scoped-VMEM cap (v7x: 64 MiB physical -> ~44 MiB cap;
    v5e/v6e: 128 MiB physical -> ~96 MiB cap)."""
    try:
        physical = int(pltpu.get_tpu_info().vmem_capacity_bytes)
    except Exception:
        physical = 64 << 20            # be conservative (assume v7x)
    if physical <= (64 << 20):
        return 44 << 20
    return 96 << 20


def _make_in_spec(block_shape, index_map, triple_buffer):
    """Input BlockSpec with optional 3-deep pipelining (guarded for older JAX)."""
    if triple_buffer and hasattr(pl, "Buffered"):
        try:
            return pl.BlockSpec(block_shape, index_map,
                                pipeline_mode=pl.Buffered(3))
        except TypeError:
            pass
    return pl.BlockSpec(block_shape, index_map)


def style_loss(x: jax.Array,
               y: jax.Array,
               *,
               target_block_bytes: int = 4 << 20,
               use_bf16_inputs: bool = False,
               allow_fused: bool = True,
               split_hw: bool = True) -> jax.Array:
    """Pallas equivalent of StyleLoss.forward(x, y).  x, y: (B, C, H, W)."""
    assert x.shape == y.shape, "x and y must share a shape"
    B, C, H, W = x.shape
    HW = H * W

    if use_bf16_inputs and x.dtype == jnp.float32:
        # Halves HBM read traffic where the kernel is mem-bound (v5e/v6e);
        # f32 MXU accumulation keeps the reduction precision.
        x = x.astype(jnp.bfloat16)
        y = y.astype(jnp.bfloat16)
    itemsize = jnp.dtype(x.dtype).itemsize

    vmem_cap = _vmem_cap_bytes()

    # ---- tile sizing by byte budget (bounded regardless of image size) ----
    hw128 = _round_up(HW, _LANE)
    step_bytes_target = min(int(target_block_bytes), vmem_cap // 6)
    # Per step we read one tile of x AND one of y (or one stacked 2C tile).
    tile_budget = max(_LANE,
                      _round_down(step_bytes_target // (2 * C * itemsize), _LANE))
    tile_budget = min(tile_budget, hw128)
    num_k_total = _cdiv(hw128, tile_budget)

    # Two-way HW split -> both v7x TensorCores do useful work when B == 1.
    num_splits = 2 if (split_hw and B == 1 and num_k_total >= 2) else 1
    num_k = _cdiv(num_k_total, num_splits)                   # k steps per split
    tile_hw = _round_up(_cdiv(hw128, num_splits * num_k), _LANE)
    hw_pad = num_splits * num_k * tile_hw

    fused = bool(allow_fused and (2 * C) <= 128)   # 2C <= one MXU tile (all gens)

    # ---- glue: flatten spatial dims, zero-pad to the tiled extent ----------
    xf = x.reshape(B, C, HW)
    yf = y.reshape(B, C, HW)
    pad = hw_pad - HW
    if pad:
        xf = jnp.pad(xf, ((0, 0), (0, 0), (0, pad)))   # zero cols: Gram-neutral
        yf = jnp.pad(yf, ((0, 0), (0, 0), (0, pad)))

    gram_scale = 1.0 / float(B * C * H * W)        # G.div(b * c * h * w)
    mse_denom = float(B * C * C)                   # mse_loss mean over (B, C, C)

    # ---- VMEM budget / buffering -------------------------------------------
    step_in_bytes = 2 * C * tile_hw * itemsize
    acc_bytes = (2 * C) * (2 * C) * 4 if fused else 2 * C * C * 4
    triple = num_k >= 3 and (3 * step_in_bytes + acc_bytes + (4 << 20)) <= vmem_cap
    nbuf = 3 if triple else 2
    vmem_need = nbuf * step_in_bytes + acc_bytes + 2 * C * C * 4
    vmem_limit = int(min(max(int(1.25 * vmem_need) + (2 << 20), 16 << 20), vmem_cap))

    def in_index_map(s, b, k):
        return (b, 0, s * num_k + k)

    out_spec = pl.BlockSpec((1, 1, C, C), lambda s, b, k: (s, b, 0, 0))
    out_shape = jax.ShapeDtypeStruct((num_splits, B, C, C), jnp.float32)
    compiler_params = pltpu.CompilerParams(
        dimension_semantics=("parallel", "parallel", "arbitrary"),
        vmem_limit_bytes=vmem_limit,
    )

    if fused:
        # One DMA stream / one MXU pass per step.  (The stack is one extra
        # wrapper-side HBM copy; pass allow_fused=False to avoid it.)
        xy = jnp.concatenate([xf, yf], axis=1)            # (B, 2C, HW_pad)
        kernel = functools.partial(_gram_diff_fused_kernel, C=C)
        in_specs = [_make_in_spec((1, 2 * C, tile_hw), in_index_map, triple)]
        scratch_shapes = [pltpu.VMEM((2 * C, 2 * C), jnp.float32)]
        operands = (xy,)
    else:
        kernel = _gram_diff_split_kernel
        in_specs = [_make_in_spec((1, C, tile_hw), in_index_map, triple),
                    _make_in_spec((1, C, tile_hw), in_index_map, triple)]
        scratch_shapes = [pltpu.VMEM((C, C), jnp.float32),
                          pltpu.VMEM((C, C), jnp.float32)]
        operands = (xf, yf)

    partial_diff = pl.pallas_call(
        kernel,
        out_shape=out_shape,
        grid_spec=pltpu.PrefetchScalarGridSpec(
            num_scalar_prefetch=0,
            grid=(num_splits, B, num_k),
            in_specs=in_specs,
            out_specs=out_spec,
            scratch_shapes=scratch_shapes,
        ),
        compiler_params=compiler_params,
    )(*operands)

    # Tiny final combine in plain JAX: sum split partials, normalize, MSE mean.
    diff = jnp.sum(partial_diff, axis=0) * jnp.float32(gram_scale)   # (B, C, C)
    return jnp.sum(diff * diff) / jnp.float32(mse_denom)


# --------------------------------------------------------------------------
# Pure-JAX reference mirroring the PyTorch module (for verification).
# --------------------------------------------------------------------------
def _reference_style_loss(x, y):
    B, C, H, W = x.shape
    fx = x.reshape(B, C, H * W).astype(jnp.float32)
    fy = y.reshape(B, C, H * W).astype(jnp.float32)
    hi = lax.Precision.HIGHEST
    gx = jnp.einsum("bcs,bds->bcd", fx, fx, precision=hi) / (B * C * H * W)
    gy = jnp.einsum("bcs,bds->bcd", fy, fy, precision=hi) / (B * C * H * W)
    return jnp.mean((gx - gy) ** 2)


if __name__ == "__main__":
    key = jax.random.PRNGKey(0)
    kx, ky = jax.random.split(key)

    # StyleLoss has no parameters; just deterministic feature maps (B,C,H,W).
    B, C, H, W = 2, 4, 16, 16
    x = jax.random.normal(kx, (B, C, H, W), dtype=jnp.float32)
    y = jax.random.normal(ky, (B, C, H, W), dtype=jnp.float32)
    ref = jax.block_until_ready(_reference_style_loss(x, y))

    # 1) Default path (fused single-matmul, single HW tile).
    loss = jax.block_until_ready(style_loss(x, y))
    assert jnp.allclose(loss, ref, rtol=1e-4, atol=1e-7), (loss, ref)

    # 2) Tiny byte budget -> multi-tile Gram accumulation over the HW axis.
    loss2 = jax.block_until_ready(style_loss(x, y, target_block_bytes=4096))
    assert jnp.allclose(loss2, ref, rtol=1e-4, atol=1e-7), (loss2, ref)

    # 3) Non-128-divisible spatial extent + B=1: exercises zero-padding and
    #    the two-way HW split (dual-TC path on v7x), fused kernel.
    B2, C2, H2, W2 = 1, 4, 9, 15
    x2 = jax.random.normal(kx, (B2, C2, H2, W2), dtype=jnp.float32)
    y2 = jax.random.normal(ky, (B2, C2, H2, W2), dtype=jnp.float32)
    ref2 = jax.block_until_ready(_reference_style_loss(x2, y2))
    loss3 = jax.block_until_ready(style_loss(x2, y2, target_block_bytes=4096))
    assert jnp.allclose(loss3, ref2, rtol=1e-4, atol=1e-7), (loss3, ref2)

    # 4) Same shapes, forcing the two-matmul (large-C) kernel path.
    loss4 = jax.block_until_ready(
        style_loss(x2, y2, target_block_bytes=4096, allow_fused=False))
    assert jnp.allclose(loss4, ref2, rtol=1e-4, atol=1e-7), (loss4, ref2)

    # 5) bf16 input-traffic option (looser tolerance: bf16 feature reads).
    loss5 = jax.block_until_ready(style_loss(x, y, use_bf16_inputs=True))
    assert jnp.allclose(loss5, ref, rtol=1e-1, atol=1e-5), (loss5, ref)

    print("KERNEL_OK")
</pallas_src>

<mosaic_0001>
module attributes {stable_mosaic.version = 11 : i64} {
  func.func @_gram_diff_fused_kernel(%arg0: i32, %arg1: i32, %arg2: i32, %arg3: memref<1x8x256xf32, #tpu.memory_space<vmem>>, %arg4: memref<1x1x4x4xf32, #tpu.memory_space<vmem>>, %arg5: memref<8x8xf32, #tpu.memory_space<vmem>>) attributes {dimension_semantics = [#tpu.dimension_semantics<parallel>, #tpu.dimension_semantics<parallel>, #tpu.dimension_semantics<arbitrary>], iteration_bounds = array<i64: 1, 2, 1>, scalar_prefetch = 0 : i64, scratch_operands = 1 : i64, tpu.core_type = #tpu.core_type<tc>, window_params = [{transform_indices = @transform_0, window_bounds = array<i64: 1, 8, 256>}, {transform_indices = @transform_1, window_bounds = array<i64: 1, 1, 4, 4>}]} {
    %c0_i32 = arith.constant 0 : i32
    %0 = arith.cmpi eq, %arg2, %c0_i32 : i32
    %1 = arith.extui %0 : i1 to i32
    %c0_i32_0 = arith.constant 0 : i32
    %2 = arith.cmpi ne, %1, %c0_i32_0 : i32
    scf.if %2 {
      %cst_9 = arith.constant 0.000000e+00 : f32
      %12 = vector.broadcast %cst_9 : f32 to vector<8x8xf32>
      %c0_10 = arith.constant 0 : index
      %c0_11 = arith.constant 0 : index
      %13 = vector.load %arg5[%c0_10, %c0_11] : memref<8x8xf32, #tpu.memory_space<vmem>>, vector<8x8xf32>
      tpu.vector_store %arg5[%c0_10, %c0_11], %12 {strides = array<i32>} : memref<8x8xf32, #tpu.memory_space<vmem>>, vector<8x8xf32>,
    } else {
    }
    %c0 = arith.constant 0 : index
    %c0_1 = arith.constant 0 : index
    %c0_2 = arith.constant 0 : index
    %3 = vector.load %arg3[%c0, %c0_1, %c0_2] : memref<1x8x256xf32, #tpu.memory_space<vmem>>, vector<1x8x256xf32>
    %4 = vector.shape_cast %3 : vector<1x8x256xf32> to vector<8x256xf32>
    %c0_3 = arith.constant 0 : index
    %c0_4 = arith.constant 0 : index
    %5 = vector.load %arg5[%c0_3, %c0_4] : memref<8x8xf32, #tpu.memory_space<vmem>>, vector<8x8xf32>
    %cst = arith.constant dense<0.000000e+00> : vector<8x8xf32>
    %6 = tpu.matmul %4, %4, %cst {dimension_numbers = #tpu.dot_dimension_numbers<[1], [1], [0], [0], [0, 0, 1, 0], [], []>} : vector<8x256xf32>, vector<8x256xf32>, vector<8x8xf32> -> vector<8x8xf32>
    %7 = arith.addf %5, %6 : vector<8x8xf32>
    %c0_5 = arith.constant 0 : index
    %c0_6 = arith.constant 0 : index
    %8 = vector.load %arg5[%c0_5, %c0_6] : memref<8x8xf32, #tpu.memory_space<vmem>>, vector<8x8xf32>
    tpu.vector_store %arg5[%c0_5, %c0_6], %7 {strides = array<i32>} : memref<8x8xf32, #tpu.memory_space<vmem>>, vector<8x8xf32>,
    %c0_i32_7 = arith.constant 0 : i32
    %9 = arith.cmpi eq, %arg2, %c0_i32_7 : i32
    %10 = arith.extui %9 : i1 to i32
    %c0_i32_8 = arith.constant 0 : i32
    %11 = arith.cmpi ne, %10, %c0_i32_8 : i32
    scf.if %11 {
      %c0_9 = arith.constant 0 : index
      %c0_10 = arith.constant 0 : index
      %12 = vector.load %arg5[%c0_9, %c0_10] : memref<8x8xf32, #tpu.memory_space<vmem>>, vector<8x8xf32>
      %13 = vector.extract_strided_slice %12 {offsets = [0, 0], sizes = [4, 4], strides = [1, 1]} : vector<8x8xf32> to vector<4x4xf32>
      %14 = vector.extract_strided_slice %12 {offsets = [4, 4], sizes = [4, 4], strides = [1, 1]} : vector<8x8xf32> to vector<4x4xf32>
      %15 = arith.subf %13, %14 : vector<4x4xf32>
      %c0_11 = arith.constant 0 : index
      %c0_12 = arith.constant 0 : index
      %c0_13 = arith.constant 0 : index
      %c0_14 = arith.constant 0 : index
      %16 = vector.load %arg4[%c0_11, %c0_12, %c0_13, %c0_14] : memref<1x1x4x4xf32, #tpu.memory_space<vmem>>, vector<1x1x4x4xf32>
      %17 = vector.shape_cast %16 : vector<1x1x4x4xf32> to vector<4x4xf32>
      %18 = vector.shape_cast %15 : vector<4x4xf32> to vector<1x1x4x4xf32>
      tpu.vector_store %arg4[%c0_11, %c0_12, %c0_13, %c0_14], %18 {strides = array<i32>} : memref<1x1x4x4xf32, #tpu.memory_space<vmem>>, vector<1x1x4x4xf32>,
    } else {
    }
    return
  }
  func.func @transform_0(%arg0: i32, %arg1: i32, %arg2: i32) -> (i32, i32, i32) {
    %c1_i32 = arith.constant 1 : i32
    %0 = arith.muli %arg0, %c1_i32 : i32
    %1 = arith.addi %0, %arg2 : i32
    %c0_i32 = arith.constant 0 : i32
    %c0_i32_0 = arith.constant 0 : i32
    return %arg1, %c0_i32, %1 : i32, i32, i32
  }
  func.func @transform_1(%arg0: i32, %arg1: i32, %arg2: i32) -> (i32, i32, i32, i32) {
    %c0_i32 = arith.constant 0 : i32
    %c0_i32_0 = arith.constant 0 : i32
    %c0_i32_1 = arith.constant 0 : i32
    return %arg0, %arg1, %c0_i32, %c0_i32_0 : i32, i32, i32, i32
  }
}

</mosaic_0001>

<llo_original>
// kernel: tpu_custom_call.1
$region0: #{tpu_custom_call.1}
  #allocation0 [shape = 'u32[]', space=smem, size = 0x4, offset = 0x4, fixed_abs, tag = 'smem constant byte address 0x4 - core index']
  #allocation1 [shape = 'u32[144,128]{1,0:T(1,128)}', space=vmem, size = 0x12000, scoped, tag = 'internal scratch']
  #allocation2 [shape = 'f32[8,8]{1,0:T(8,128)}', space=vmem, size = 0x1000, scoped, tag = 'scratch operand']
  %s0 = inlined_call_operand.hbm [shape: f32[2,8,256], index: 0, kind: input, shape index: {}]
  %s1 = inlined_call_operand.hbm [shape: f32[1,2,4,4], index: 1, kind: output, shape index: {}]
  %s2 = sld [smem:[#allocation0]]
  $region49: #{tpu_custom_call.1} parent=0
    _
  %s4 = ssub.s32 1, %s2
  %s5 = scalar_select 0, %s4, %s2
  $region1: #{tpu_custom_call.1} parent=0
    #allocation3 [shape = 'u8[16384]{0}', space=vmem, size = 0x4000, scoped, tag = 'input window, operand 0']
    #allocation4 [shape = 's32[2]{0}', space=sflag, size = 0x8, scoped, tag = 'scoped memory for tpu_custom_call.1']
    #allocation5 [shape = 's32[2]{0}', space=sflag, size = 0x8, scoped, tag = 'scoped memory for tpu_custom_call.1']
    #allocation6 [shape = 'u8[4096]{0}', space=vmem, size = 0x1000, scoped, tag = 'output window, operand 0']
    %6 = vsyncpa [#allocation4], 0
    %s7 = scalar_lea.sflag [#allocation4], 1
    %8 = vsyncpa %s7, 0
    %9 = vsyncpa [#allocation5], 0
    %s10 = scalar_lea.sflag [#allocation5], 1
    %11 = vsyncpa %s10, 0
    loop: start=0, step=1, limit=4
    $region2: #{tpu_custom_call.1} parent=1 // loop_pre_header
      _
    $region3: #{tpu_custom_call.1} parent=1 // loop_header
      %s13 = sphi 0, %s17
      %p14 = scmp.ge.s32.totalorder %s13, 4
      %s20 = sphi 0, %s39
      %s21 = sphi 0, %s35
      %s22 = sphi 0, %s31
      %s23 = sphi 0, %s20
      %s24 = sphi 0, %s21
      %s25 = sphi 0, %s22
      %s26 = sphi 0, %s23
      %s27 = sphi 0, %s24
      %s28 = sphi 0, %s25
      %s46 = sphi 0, %s48
      %s49 = sphi 0, %s46
      %s50 = sphi 0, %s49
      %s66 = sphi 0, %s50
      %s74 = sphi 0, %s76
      %s77 = sphi 0, %s74
      %s78 = sphi 0, %s77
      %s94 = sphi 0, %s78
    $region4: #{tpu_custom_call.1} parent=1 // loop_header_branch
      %16 = sbr.rel (%p14) target = $region8
    $region5: #{tpu_custom_call.1} parent=1 // loop_body
      %s18 = ssub.s32 %s13, 1
      %s19 = ssub.s32 %s13, 2
      %s29 = sadd.s32 1, %s22
      %p30 = scmp.ge.s32.totalorder %s29, 1
      %s31 = scalar_select %p30, 0, %s29
      %s32 = sadd.s32 1, %s21
      %s33 = scalar_select %p30, %s32, %s21
      %p34 = scmp.ge.s32.totalorder %s33, 2
      %s35 = scalar_select %p34, 0, %s33
      %s36 = sadd.s32 1, %s20
      %s37 = scalar_select %p34, %s36, %s20
      %p38 = scmp.ge.s32.totalorder %s37, 1
      %s39 = scalar_select %p38, 0, %s37
      %s40 = sadd.s32 %s20, %s22
      %s41 = sadd.s32 %s39, %s31
      %s42 = ssub.s32 %s21, %s35
      %s43 = ssub.s32 %s40, %s41
      %s44 = sor.u32 %s42, %s43
      %p45 = scmp.eq.s32.totalorder %s44, 0
      %s47 = sadd.s32 %s46, 1
      %s48 = scalar_select %p45, %s46, %s47
      %p51 = pneg %p45
      %p52 = scmp.eq.s32.totalorder %s13, 1
      %p53 = por %p51, %p52
      %p54 = scmp.ne.s32.totalorder %s46, %s49
      %p55 = scmp.eq.s32.totalorder %s13, 0
      %p56 = por %p54, %p55
      %p57 = scmp.ne.s32.totalorder %s46, %s49
      %p58 = scmp.eq.s32.totalorder %s18, 1
      %p59 = por %p57, %p58
      %p60 = scmp.ne.s32.totalorder %s49, %s50
      %p61 = scmp.eq.s32.totalorder %s18, 0
      %p62 = por %p60, %p61
      %p63 = scmp.ne.s32.totalorder %s49, %s50
      %p64 = scmp.eq.s32.totalorder %s19, 1
      %p65 = por %p63, %p64
      %p67 = scmp.ne.s32.totalorder %s50, %s66
      %p68 = scmp.eq.s32.totalorder %s19, 0
      %p69 = por %p67, %p68
      %s70 = ssub.s32 %s20, %s39
      %s71 = ssub.s32 %s21, %s35
      %s72 = sor.u32 %s70, %s71
      %p73 = scmp.eq.s32.totalorder %s72, 0
      %s75 = sadd.s32 %s74, 1
      %s76 = scalar_select %p73, %s74, %s75
      %p79 = pneg %p73
      %p80 = scmp.eq.s32.totalorder %s13, 1
      %p81 = por %p79, %p80
      %p82 = scmp.ne.s32.totalorder %s74, %s77
      %p83 = scmp.eq.s32.totalorder %s13, 0
      %p84 = por %p82, %p83
      %p85 = scmp.ne.s32.totalorder %s74, %s77
      %p86 = scmp.eq.s32.totalorder %s18, 1
      %p87 = por %p85, %p86
      %p88 = scmp.ne.s32.totalorder %s77, %s78
      %p89 = scmp.eq.s32.totalorder %s18, 0
      %p90 = por %p88, %p89
      %p91 = scmp.ne.s32.totalorder %s77, %s78
      %p92 = scmp.eq.s32.totalorder %s19, 1
      %p93 = por %p91, %p92
      %p95 = scmp.ne.s32.totalorder %s78, %s94
      %p96 = scmp.eq.s32.totalorder %s19, 0
      %p97 = por %p95, %p96
      %p98 = scmp.le.s32.totalorder 1, %s13
      %p99 = scmp.lt.s32.totalorder %s13, 3
      %p100 = pnand %p98, %p99
      %p101 = pneg %p100
      // Predicated region
      $region9: #{tpu_custom_call.1} parent=5 // pred_check
        _
      $region10: #{tpu_custom_call.1} parent=5 // pred_check_branch
        %103 = sbr.rel (%p100) target = $region12
      $region11: #{tpu_custom_call.1} parent=5 // pred_region
        %s104 = ssub.s32 %s13, 1
      $region12: #{tpu_custom_call.1} parent=5 // pred_fallthru
        _
      %p105 = scmp.lt.s32.totalorder %s13, 2
      // Predicated region
      $region13: #{tpu_custom_call.1} parent=5 // pred_check
        %p106 = pneg %p105
      $region14: #{tpu_custom_call.1} parent=5 // pred_check_branch
        %108 = sbr.rel (%p106) target = $region16
      $region15: #{tpu_custom_call.1} parent=5 // pred_region
        // Predicated region
        $region17: #{tpu_custom_call.1} parent=15 // pred_check
          %p109 = pneg %p56
        $region18: #{tpu_custom_call.1} parent=15 // pred_check_branch
          %111 = sbr.rel (%p109) target = $region20
        $region19: #{tpu_custom_call.1} parent=15 // pred_region
          %s112 = sand.u32 %s46, 1
          %s113 = scalar_lea.sflag [#allocation4], %s112
          %s114 = sand.u32 %s46, 1
          %s115 = smul.addr %s114, 16
          %s116 = scalar_lea.vmem [#allocation3], %s115
          %s117 = sadd.s32 %s20, %s22
          %s118 = smul.u32 2, %s117
          %s120 = ssub.s32 256, 256
          %121 = vsyncadd %s113, %s120
          %s122 = smul.addr %s21, 2
          %s123 = sadd.s32 %s118, %s122
          %s124 = smul.addr %s123, 128
          %s125 = scalar_lea.hbm %s0, %s124
          %s127 = sshll.u32 %s116, 4
          %s128 = int_to_ptr.vmem [resolvable:$true] %s127
          %130 = dma.hbm_to_vmem [thread:$0]  %s125, 256, %s128, %s113
        $region20: #{tpu_custom_call.1} parent=15 // pred_fallthru
          _
      $region16: #{tpu_custom_call.1} parent=5 // pred_fallthru
        _
      %p131 = scmp.le.s32.totalorder 1, %s13
      %p132 = scmp.lt.s32.totalorder %s13, 3
      %p133 = pnand %p131, %p132
      %p134 = pneg %p133
      // Predicated region
      $region21: #{tpu_custom_call.1} parent=5 // pred_check
        _
      $region22: #{tpu_custom_call.1} parent=5 // pred_check_branch
        %136 = sbr.rel (%p133) target = $region24
      $region23: #{tpu_custom_call.1} parent=5 // pred_region
        %s137 = ssub.s32 %s13, 1
        %s138 = sand.u32 %s49, 1
        %s139 = scalar_lea.sflag [#allocation4], %s138
        %s140 = sand.u32 %s49, 1
        %s141 = smul.addr %s140, 16
        %s142 = scalar_lea.vmem [#allocation3], %s141
        // Predicated region
        $region25: #{tpu_custom_call.1} parent=23 // pred_check
          %p143 = pneg %p62
        $region26: #{tpu_custom_call.1} parent=23 // pred_check_branch
          %145 = sbr.rel (%p143) target = $region28
        $region27: #{tpu_custom_call.1} parent=23 // pred_region
          %146 = dma.done %s139, 256
        $region28: #{tpu_custom_call.1} parent=23 // pred_fallthru
          _
        %s147 = sand.u32 %s49, 1
        %s148 = scalar_lea.sflag [#allocation4], %s147
        %s149 = sand.u32 %s49, 1
        %s150 = smul.addr %s149, 16
        %s151 = scalar_lea.vmem [#allocation3], %s150
        %p152 = pneg %p62
        %p153 = pneg %p59
        %p154 = pneg %p90
        %p155 = pneg %p87
        %s156 = sand.u32 %s77, 1
        %s157 = scalar_lea.sflag [#allocation5], %s156
        %s158 = sand.u32 %s77, 1
        %s159 = smul.addr %s158, 4
        %s160 = scalar_lea.vmem [#allocation6], %s159
        %s161 = sadd.s32 %s23, %s25
        %s162 = smul.u32 2, %s161
        %p163 = scmp.eq.s32.totalorder %s25, 0
        // Predicated region
        $region29: #{tpu_custom_call.1} parent=23 // pred_check
          %p164 = pneg %p163
        $region30: #{tpu_custom_call.1} parent=23 // pred_check_branch
          %166 = sbr.rel (%p164) target = $region32
        $region31: #{tpu_custom_call.1} parent=23 // pred_region
          %vm167 = vcmask 64512
          %168 = vst.msk [vmem:[#allocation2] sm:$0xff] %vm167, 0.0
        $region32: #{tpu_custom_call.1} parent=23 // pred_fallthru
          _
        %v169 = vld [vmem:[%s142] sm:$0xff]
        %v170 = vld [vmem:[%s142 + $0x8] sm:$0xff]
        %v171 = vld [vmem:[#allocation2] sm:$0xff]
        %172 = vmatprep.subr.mxu0 %v170
        %173 = vmatpush1.xpose.msra.mxu0 %v169
        %174 = vmatprep.subr.mxu0 0.0
        %175 = vmatpush1.xpose.msra.mxu0 0.0
        %176 = vmatprep.subr.mxu0 0.0
        %177 = vmatpush1.xpose.msra.mxu0 0.0
        %178 = vmatprep.subr.mxu0 0.0
        %179 = vmatpush1.xpose.msra.mxu0 0.0
        %180 = vmatprep.subr.mxu0 0.0
        %181 = vmatpush1.xpose.msra.mxu0 0.0
        %182 = vmatprep.subr.mxu0 0.0
        %183 = vmatpush1.xpose.msra.mxu0 0.0
        %184 = vmatprep.subr.mxu0 0.0
        %185 = vmatpush1.xpose.msra.mxu0 0.0
        %186 = vmatprep.subr.mxu0 0.0
        %187 = vmatpush1.xpose.msra.mxu0 0.0
        %188 = vmatprep.subr.mxu0 0.0
        %189 = vmatpush1.xpose.msra.mxu0 0.0
        %190 = vmatprep.subr.mxu0 0.0
        %191 = vmatpush1.xpose.msra.mxu0 0.0
        %192 = vmatprep.subr.mxu0 0.0
        %193 = vmatpush1.xpose.msra.mxu0 0.0
        %194 = vmatprep.subr.mxu0 0.0
        %195 = vmatpush1.xpose.msra.mxu0 0.0
        %196 = vmatprep.subr.mxu0 0.0
        %197 = vmatpush1.xpose.msra.mxu0 0.0
        %198 = vmatprep.subr.mxu0 0.0
        %199 = vmatpush1.xpose.msra.mxu0 0.0
        %200 = vmatprep.subr.mxu0 0.0
        %201 = vmatpush1.xpose.msra.mxu0 0.0
        %202 = vmatprep.subr.mxu0 0.0
        %203 = vmatpush1.xpose.msra.mxu0 0.0
        %204 = vmatprep.subr.mxu0 0.0
        %205 = vmatpush1.xpose.msra.mxu0 0.0
        %206 = vmatprep.subr.mxu0 0.0
        %207 = vmatpush1.xpose.msra.mxu0 0.0
        %208 = vmatprep.subr.mxu0 0.0
        %209 = vmatpush1.xpose.msra.mxu0 0.0
        %210 = vmatprep.subr.mxu0 0.0
        %211 = vmatpush1.xpose.msra.mxu0 0.0
        %212 = vmatprep.subr.mxu0 0.0
        %213 = vmatpush1.xpose.msra.mxu0 0.0
        %214 = vmatprep.subr.mxu0 0.0
        %215 = vmatpush1.xpose.msra.mxu0 0.0
        %216 = vmatprep.subr.mxu0 0.0
        %217 = vmatpush1.xpose.msra.mxu0 0.0
        %218 = vmatprep.subr.mxu0 0.0
        %219 = vmatpush1.xpose.msra.mxu0 0.0
        %220 = vmatprep.subr.mxu0 0.0
        %221 = vmatpush1.xpose.msra.mxu0 0.0
        %222 = vmatprep.subr.mxu0 0.0
        %223 = vmatpush1.xpose.msra.mxu0 0.0
        %224 = vmatprep.subr.mxu0 0.0
        %225 = vmatpush1.xpose.msra.mxu0 0.0
        %226 = vmatprep.subr.mxu0 0.0
        %227 = vmatpush1.xpose.msra.mxu0 0.0
        %228 = vmatprep.subr.mxu0 0.0
        %229 = vmatpush1.xpose.msra.mxu0 0.0
        %230 = vmatprep.subr.mxu0 0.0
        %231 = vmatpush1.xpose.msra.mxu0 0.0
        %232 = vmatprep.subr.mxu0 0.0
        %233 = vmatpush1.xpose.msra.mxu0 0.0
        %234 = vmatprep.subr.mxu0 0.0
        %235 = vmatpush1.xpose.msra.mxu0 0.0
        %236 = vmatprep.mubr.f32.mxu0 %v170
        %237 = vmatmul.mubr.f32.gmra.mrb[0].mxu0 %v169
        %v238 = vpop.f32.mrb[0].mxu0
        %v239 = vadd.f32 0.0, %v238
        %v240 = vpop.f32.mrb[0].mxu0
        %241 = vdwg.mxu0
        %v242 = vadd.f32 %v171, %v239
        %vm243 = vcmask 64512
        %244 = vst.msk [vmem:[#allocation2] sm:$0xff] %vm243, %v242
        // Predicated region
        $region33: #{tpu_custom_call.1} parent=23 // pred_check
          %p245 = pneg %p163
        $region34: #{tpu_custom_call.1} parent=23 // pred_check_branch
          %247 = sbr.rel (%p245) target = $region36
        $region35: #{tpu_custom_call.1} parent=23 // pred_region
          %v248 = vld [vmem:[#allocation2] sm:$0xff]
          %v250 = vrot.slane %v248, 4
          %251 = vrot.lane.b32.xlu0 %v250, 124
          %v252 = vpop.permute.xlu0 %251
          %v254 = vsub.f32 %v248, %v252
          %vm255 = vcmask 27648
          %256 = vst.msk [vmem:[%s160] sm:$0xf] %vm255, %v254
        $region36: #{tpu_custom_call.1} parent=23 // pred_fallthru
          _
        %s257 = sand.u32 %s77, 1
        %s258 = scalar_lea.sflag [#allocation5], %s257
        %s259 = sand.u32 %s77, 1
        %s260 = smul.addr %s259, 4
        %s261 = scalar_lea.vmem [#allocation6], %s260
        // Predicated region
        $region37: #{tpu_custom_call.1} parent=23 // pred_check
          %p262 = pneg %p87
        $region38: #{tpu_custom_call.1} parent=23 // pred_check_branch
          %264 = sbr.rel (%p262) target = $region40
        $region39: #{tpu_custom_call.1} parent=23 // pred_region
          %s266 = ssub.s32 64, 64
          %267 = vsyncadd %s258, %s266
          %s268 = smul.addr %s23, 2
          %s269 = sadd.s32 %s24, %s268
          %s270 = smul.addr %s269, 64
          %s271 = scalar_lea.hbm %s1, %s270
          %s273 = sshll.u32 %s261, 4
          %s274 = int_to_ptr.vmem [resolvable:$true] %s273
          %276 = dma.vmem_to_hbm [thread:$0]  %s274, 64, %s271, %s258
        $region40: #{tpu_custom_call.1} parent=23 // pred_fallthru
          _
      $region24: #{tpu_custom_call.1} parent=5 // pred_fallthru
        _
      %p277 = scmp.le.s32.totalorder 2, %s13
      // Predicated region
      $region41: #{tpu_custom_call.1} parent=5 // pred_check
        %p278 = pneg %p277
      $region42: #{tpu_custom_call.1} parent=5 // pred_check_branch
        %280 = sbr.rel (%p278) target = $region44
      $region43: #{tpu_custom_call.1} parent=5 // pred_region
        %s281 = ssub.s32 %s13, 2
        // Predicated region
        $region45: #{tpu_custom_call.1} parent=43 // pred_check
          %p282 = pneg %p93
        $region46: #{tpu_custom_call.1} parent=43 // pred_check_branch
          %284 = sbr.rel (%p282) target = $region48
        $region47: #{tpu_custom_call.1} parent=43 // pred_region
          %s285 = sand.u32 %s78, 1
          %s286 = scalar_lea.sflag [#allocation5], %s285
          %s287 = sand.u32 %s78, 1
          %s288 = smul.addr %s287, 4
          %s289 = scalar_lea.vmem [#allocation6], %s288
          %290 = dma.done %s286, 64
        $region48: #{tpu_custom_call.1} parent=43 // pred_fallthru
          _
      $region44: #{tpu_custom_call.1} parent=5 // pred_fallthru
        _
    $region6: #{tpu_custom_call.1} parent=1 // loop_footer
      %s17 = sadd.s32 1, %s13
    $region7: #{tpu_custom_call.1} parent=1 // loop_footer_branch
      %12 = sbr.rel target = $region3
    $region8: #{tpu_custom_call.1} parent=1 // loop_exit
      _
    %291 = vsyncpa [#allocation4], 1
    %s292 = scalar_lea.sflag [#allocation4], 1
    %293 = vsyncpa %s292, 1
    %294 = vsyncpa [#allocation5], 1
    %s295 = scalar_lea.sflag [#allocation5], 1
    %296 = vsyncpa %s295, 1

</llo_original>
